<compile_context>
chip_gen: v6e
topology: v6e:2x2x1
jax: 0.10.0
libtpu: 0.0.40
codegen_flags: <defaults>
</compile_context>

<pallas_src>
import functools

import jax
import jax.numpy as jnp
from jax.experimental import pallas as pl
from jax.experimental.pallas import tpu as pltpu


def _renderer_kernel(pix_ref, pts_ref, feat_ref, out_ref, acc_ref,
                     *, r_sq, eps, chunk):
    """One (batch, pixel-tile, point-tile) grid step.

    pix_ref : (2, HW_T)      grid-invariant pixel NDC coords (row0=x, row1=y)
    pts_ref : (1, P_T, 2)    point NDC positions for this point tile
    feat_ref: (1, C+1, P_T)  point features + trailing ones row (channels-major)
    out_ref : (1, C, HW_T)   composited image tile (lane-dense over pixels)
    acc_ref : (C+1, HW_T)    f32 accumulator; rows 0..C-1 = sum w*f, row C = sum w
    """
    p_step = pl.program_id(2)

    @pl.when(p_step == 0)
    def _init():
        acc_ref[...] = jnp.zeros_like(acc_ref)

    pts = pts_ref[0]                          # (P_T, 2)
    px = pts[:, 0:1]                          # (P_T, 1)
    py = pts[:, 1:2]                          # (P_T, 1)
    feat = feat_ref[0]                        # (C+1, P_T)

    hw_t = acc_ref.shape[-1]
    n_chunks = hw_t // chunk                  # static Python int

    def body(c, carry):
        off = pl.multiple_of(c * chunk, chunk)
        x = pix_ref[0:1, pl.ds(off, chunk)]   # (1, chunk)
        y = pix_ref[1:2, pl.ds(off, chunk)]   # (1, chunk)
        dx = x - px                           # (P_T, chunk)
        dy = y - py                           # (P_T, chunk)
        # Rescaled weight: w = relu(r^2 - d^2) == r^2 * relu(1 - d^2/r^2);
        # the global r^2 scale cancels in the normalized composite (eps is
        # rescaled in the finalize step).  True-zero coverage stays exactly 0.
        w = jnp.maximum(r_sq - (dx * dx + dy * dy), 0.0)
        # Single MXU matmul produces both the feature rows and (via the ones
        # row of `feat`) the weight-sum row; normalization commutes with it.
        acc_ref[:, pl.ds(off, chunk)] += jnp.dot(
            feat, w, preferred_element_type=jnp.float32)
        return carry

    jax.lax.fori_loop(0, n_chunks, body, 0, unroll=True)

    @pl.when(p_step == pl.num_programs(2) - 1)
    def _finalize():
        c_out = out_ref.shape[1]
        # eps scaled by r^2 keeps this exactly equivalent to
        # relu(1 - d^2/r^2) / (sum w + eps).
        den = acc_ref[c_out:c_out + 1, :] + (eps * r_sq)      # (1, HW_T)
        inv = pl.reciprocal(den, approx=True)                 # EUP slot
        inv = inv * (2.0 - den * inv)                         # Newton-Raphson
        inv = inv * (2.0 - den * inv)                         # 2nd step (cheap)
        out_ref[0] = (acc_ref[0:c_out, :] * inv).astype(out_ref.dtype)


def _pick_tile(total, target, align):
    """Largest multiple of `align` <= target that divides `total`; else full."""
    if total <= target:
        return total
    t = (target // align) * align
    while t >= align:
        if total % t == 0:
            return t
        t -= align
    return total


def shading_points_renderer(points_xy, features, *, image_size=16,
                            radius=0.3, eps=1e-8,
                            hw_tile=8192, p_tile=2048, chunk_tile=1024):
    """points_xy: (N, P, 2) f32 NDC positions; features: (N, P, C) f32.

    Returns images of shape (N, C, H, W) (NCHW, matching the PyTorch module).
    """
    N, P, _ = points_xy.shape
    C = features.shape[-1]
    H = W = image_size
    HW = H * W

    # ---- Tile selection -----------------------------------------------------
    HW_T = _pick_tile(HW, hw_tile, 128)
    # v7x has 2 TensorCores that shard the parallel grid axes; make sure there
    # are at least 2 parallel blocks so neither core idles.
    while N * (HW // HW_T) < 2 and HW_T % 256 == 0:
        HW_T //= 2
    chunk = _pick_tile(HW_T, chunk_tile, 128)
    # Cap the staged (P_T, chunk) f32 weight field at ~16 MiB so the kernel
    # stays within v7x's 64 MiB VMEM (v5e/v6e have 128 MiB and are also fine).
    max_pt = max(128, (((4 * 1024 * 1024) // max(chunk, 1)) // 128) * 128)
    P_T = _pick_tile(P, min(p_tile, max_pt), 128)

    # ---- Host-side prep -----------------------------------------------------
    # Channels-major features with a trailing row of ones: the blend matmul
    # (C+1, P) @ (P, HW_T) then yields both sum(w*f) and sum(w) (denominator).
    feats_aug = jnp.concatenate(
        [jnp.transpose(features, (0, 2, 1)).astype(jnp.float32),
         jnp.ones((N, 1, P), jnp.float32)], axis=1)          # (N, C+1, P)

    # Grid-invariant pixel-centre NDC coordinates (flat index = y*W + x).
    yy, xx = jnp.meshgrid(jnp.arange(H, dtype=jnp.float32),
                          jnp.arange(W, dtype=jnp.float32), indexing="ij")
    x_ndc = (xx + 0.5) * (2.0 / W) - 1.0
    y_ndc = (yy + 0.5) * (2.0 / H) - 1.0
    pix = jnp.stack([x_ndc.reshape(-1), y_ndc.reshape(-1)], axis=0)  # (2, HW)

    kernel = functools.partial(_renderer_kernel, r_sq=float(radius * radius),
                               eps=float(eps), chunk=chunk)

    out_flat = pl.pallas_call(
        kernel,
        out_shape=jax.ShapeDtypeStruct((N, C, HW), jnp.float32),
        grid_spec=pltpu.PrefetchScalarGridSpec(
            num_scalar_prefetch=0,
            grid=(N, HW // HW_T, P // P_T),
            in_specs=[
                # Pixel coords: grid-invariant across batch and point tiles.
                pl.BlockSpec((2, HW_T), lambda b, h, p: (0, h)),
                # Point positions for this point tile.
                pl.BlockSpec((1, P_T, 2), lambda b, h, p: (b, p, 0)),
                # Point features (+ ones row) for this point tile.
                pl.BlockSpec((1, C + 1, P_T), lambda b, h, p: (b, 0, p)),
            ],
            # Output tile is resident across the (innermost) point axis.
            out_specs=pl.BlockSpec((1, C, HW_T), lambda b, h, p: (b, 0, h)),
            scratch_shapes=[
                pltpu.VMEM((C + 1, HW_T), jnp.float32),  # fused feat+denominator acc
            ]),
        compiler_params=pltpu.CompilerParams(
            dimension_semantics=("parallel", "parallel", "arbitrary"),
            vmem_limit_bytes=48 * 1024 * 1024),
    )(pix, points_xy.astype(jnp.float32), feats_aug)

    return out_flat.reshape(N, C, H, W)


def _reference(points_xy, features, *, image_size=16, radius=0.3, eps=1e-8):
    """Pure-JAX reference of rasterize + norm-weighted composite."""
    N, P, _ = points_xy.shape
    H = W = image_size
    yi, xi = jnp.meshgrid(jnp.arange(H, dtype=jnp.float32),
                          jnp.arange(W, dtype=jnp.float32), indexing="ij")
    x_ndc = (xi + 0.5) * (2.0 / W) - 1.0                 # (H, W)
    y_ndc = (yi + 0.5) * (2.0 / H) - 1.0
    pix = jnp.stack([x_ndc, y_ndc], axis=-1).reshape(-1, 2)  # (HW, 2)
    d2 = jnp.sum((pix[None, :, None, :] - points_xy[:, None, :, :]) ** 2,
                 axis=-1)                                # (N, HW, P)
    w = jnp.maximum(1.0 - d2 / (radius * radius), 0.0)
    w_norm = w / (jnp.sum(w, axis=-1, keepdims=True) + eps)
    img = jnp.einsum("npc,nhp->nch", features, w_norm)   # (N, C, HW)
    return img.reshape(N, features.shape[-1], H, W)


if __name__ == "__main__":
    # Small deterministic point cloud: N=2 batches, P=64 points, C=4 features,
    # rendered to a 16x16 image.
    key = jax.random.PRNGKey(0)
    k_pts, k_feat = jax.random.split(key)
    N, P, C, IMG = 2, 64, 4, 16

    points_xy = jax.random.uniform(k_pts, (N, P, 2), jnp.float32,
                                   minval=-0.9, maxval=0.9)
    features = jax.random.uniform(k_feat, (N, P, C), jnp.float32)

    images = shading_points_renderer(points_xy, features, image_size=IMG)
    images = jax.block_until_ready(images)

    ref = _reference(points_xy, features, image_size=IMG)
    assert images.shape == (N, C, IMG, IMG)
    assert jnp.allclose(images, ref, atol=1e-5, rtol=1e-5)
    print("KERNEL_OK")
</pallas_src>

<mosaic_0001>
module attributes {stable_mosaic.version = 11 : i64} {
  func.func @_renderer_kernel(%arg0: i32, %arg1: i32, %arg2: i32, %arg3: memref<2x256xf32, #tpu.memory_space<vmem>>, %arg4: memref<1x64x2xf32, #tpu.memory_space<vmem>>, %arg5: memref<1x5x64xf32, #tpu.memory_space<vmem>>, %arg6: memref<1x4x256xf32, #tpu.memory_space<vmem>>, %arg7: memref<5x256xf32, #tpu.memory_space<vmem>>) attributes {dimension_semantics = [#tpu.dimension_semantics<parallel>, #tpu.dimension_semantics<parallel>, #tpu.dimension_semantics<arbitrary>], iteration_bounds = array<i64: 2, 1, 1>, scalar_prefetch = 0 : i64, scratch_operands = 1 : i64, tpu.core_type = #tpu.core_type<tc>, window_params = [{transform_indices = @transform_0, window_bounds = array<i64: 2, 256>}, {transform_indices = @transform_1, window_bounds = array<i64: 1, 64, 2>}, {transform_indices = @transform_2, window_bounds = array<i64: 1, 5, 64>}, {transform_indices = @transform_3, window_bounds = array<i64: 1, 4, 256>}]} {
    %c0_i32 = arith.constant 0 : i32
    %0 = arith.cmpi eq, %arg2, %c0_i32 : i32
    %1 = arith.extui %0 : i1 to i32
    %c0_i32_0 = arith.constant 0 : i32
    %2 = arith.cmpi ne, %1, %c0_i32_0 : i32
    scf.if %2 {
      %cst_14 = arith.constant 0.000000e+00 : f32
      %37 = vector.broadcast %cst_14 : f32 to vector<5x256xf32>
      %c0_15 = arith.constant 0 : index
      %c0_16 = arith.constant 0 : index
      %38 = vector.load %arg7[%c0_15, %c0_16] : memref<5x256xf32, #tpu.memory_space<vmem>>, vector<5x256xf32>
      tpu.vector_store %arg7[%c0_15, %c0_16], %37 {strides = array<i32>} : memref<5x256xf32, #tpu.memory_space<vmem>>, vector<5x256xf32>,
    } else {
    }
    %c0 = arith.constant 0 : index
    %c0_1 = arith.constant 0 : index
    %c0_2 = arith.constant 0 : index
    %3 = vector.load %arg4[%c0, %c0_1, %c0_2] : memref<1x64x2xf32, #tpu.memory_space<vmem>>, vector<1x64x2xf32>
    %4 = vector.shape_cast %3 : vector<1x64x2xf32> to vector<64x2xf32>
    %5 = vector.extract_strided_slice %4 {offsets = [0, 0], sizes = [64, 1], strides = [1, 1]} : vector<64x2xf32> to vector<64x1xf32>
    %6 = vector.extract_strided_slice %4 {offsets = [0, 1], sizes = [64, 1], strides = [1, 1]} : vector<64x2xf32> to vector<64x1xf32>
    %c0_3 = arith.constant 0 : index
    %c0_4 = arith.constant 0 : index
    %c0_5 = arith.constant 0 : index
    %7 = vector.load %arg5[%c0_3, %c0_4, %c0_5] : memref<1x5x64xf32, #tpu.memory_space<vmem>>, vector<1x5x64xf32>
    %8 = vector.shape_cast %7 : vector<1x5x64xf32> to vector<5x64xf32>
    %c0_i32_6 = arith.constant 0 : i32
    %c256_i32 = arith.constant 256 : i32
    %9 = arith.muli %c0_i32_6, %c256_i32 : i32
    %10 = tpu.assume_multiple %9, 256 : i32
    %c0_7 = arith.constant 0 : index
    %11 = arith.index_cast %10 : i32 to index
    %12 = vector.load %arg3[%c0_7, %11] : memref<2x256xf32, #tpu.memory_space<vmem>>, vector<1x256xf32>
    %c1 = arith.constant 1 : index
    %13 = arith.index_cast %10 : i32 to index
    %14 = vector.load %arg3[%c1, %13] : memref<2x256xf32, #tpu.memory_space<vmem>>, vector<1x256xf32>
    %15 = vector.broadcast %12 : vector<1x256xf32> to vector<64x256xf32>
    %16 = vector.broadcast %5 : vector<64x1xf32> to vector<64x256xf32>
    %17 = arith.subf %15, %16 : vector<64x256xf32>
    %18 = vector.broadcast %14 : vector<1x256xf32> to vector<64x256xf32>
    %19 = vector.broadcast %6 : vector<64x1xf32> to vector<64x256xf32>
    %20 = arith.subf %18, %19 : vector<64x256xf32>
    %21 = arith.mulf %17, %17 : vector<64x256xf32>
    %22 = arith.mulf %20, %20 : vector<64x256xf32>
    %23 = arith.addf %21, %22 : vector<64x256xf32>
    %cst = arith.constant 9.000000e-02 : f32
    %24 = vector.broadcast %cst : f32 to vector<64x256xf32>
    %25 = arith.subf %24, %23 : vector<64x256xf32>
    %cst_8 = arith.constant 0.000000e+00 : f32
    %26 = vector.broadcast %cst_8 : f32 to vector<64x256xf32>
    %27 = arith.maximumf %25, %26 : vector<64x256xf32>
    %c0_9 = arith.constant 0 : index
    %28 = arith.index_cast %10 : i32 to index
    %29 = vector.load %arg7[%c0_9, %28] : memref<5x256xf32, #tpu.memory_space<vmem>>, vector<5x256xf32>
    %cst_10 = arith.constant dense<0.000000e+00> : vector<5x256xf32>
    %30 = tpu.matmul %8, %27, %cst_10 {dimension_numbers = #tpu.dot_dimension_numbers<[1], [0], [0], [1], [0, 0, 1, 1], [], []>} : vector<5x64xf32>, vector<64x256xf32>, vector<5x256xf32> -> vector<5x256xf32>
    %31 = arith.addf %29, %30 : vector<5x256xf32>
    %c0_11 = arith.constant 0 : index
    %32 = arith.index_cast %10 : i32 to index
    %33 = vector.load %arg7[%c0_11, %32] : memref<5x256xf32, #tpu.memory_space<vmem>>, vector<5x256xf32>
    tpu.vector_store %arg7[%c0_11, %32], %31 {strides = array<i32>} : memref<5x256xf32, #tpu.memory_space<vmem>>, vector<5x256xf32>,
    %c1_i32 = arith.constant 1 : i32
    %c0_i32_12 = arith.constant 0 : i32
    %34 = arith.cmpi eq, %arg2, %c0_i32_12 : i32
    %35 = arith.extui %34 : i1 to i32
    %c0_i32_13 = arith.constant 0 : i32
    %36 = arith.cmpi ne, %35, %c0_i32_13 : i32
    scf.if %36 {
      %c4 = arith.constant 4 : index
      %c0_14 = arith.constant 0 : index
      %37 = vector.load %arg7[%c4, %c0_14] : memref<5x256xf32, #tpu.memory_space<vmem>>, vector<1x256xf32>
      %cst_15 = arith.constant 9.000000e-10 : f32
      %38 = vector.broadcast %cst_15 : f32 to vector<1x256xf32>
      %39 = arith.addf %37, %38 : vector<1x256xf32>
      %40 = tpu.reciprocal %39 {approx = true} : vector<1x256xf32> -> vector<1x256xf32>
      %41 = arith.mulf %39, %40 : vector<1x256xf32>
      %cst_16 = arith.constant 2.000000e+00 : f32
      %42 = vector.broadcast %cst_16 : f32 to vector<1x256xf32>
      %43 = arith.subf %42, %41 : vector<1x256xf32>
      %44 = arith.mulf %40, %43 : vector<1x256xf32>
      %45 = arith.mulf %39, %44 : vector<1x256xf32>
      %cst_17 = arith.constant 2.000000e+00 : f32
      %46 = vector.broadcast %cst_17 : f32 to vector<1x256xf32>
      %47 = arith.subf %46, %45 : vector<1x256xf32>
      %48 = arith.mulf %44, %47 : vector<1x256xf32>
      %c0_18 = arith.constant 0 : index
      %c0_19 = arith.constant 0 : index
      %49 = vector.load %arg7[%c0_18, %c0_19] : memref<5x256xf32, #tpu.memory_space<vmem>>, vector<4x256xf32>
      %50 = vector.broadcast %48 : vector<1x256xf32> to vector<4x256xf32>
      %51 = arith.mulf %49, %50 : vector<4x256xf32>
      %c0_20 = arith.constant 0 : index
      %c0_21 = arith.constant 0 : index
      %c0_22 = arith.constant 0 : index
      %52 = vector.load %arg6[%c0_20, %c0_21, %c0_22] : memref<1x4x256xf32, #tpu.memory_space<vmem>>, vector<1x4x256xf32>
      %53 = vector.shape_cast %52 : vector<1x4x256xf32> to vector<4x256xf32>
      %54 = vector.shape_cast %51 : vector<4x256xf32> to vector<1x4x256xf32>
      tpu.vector_store %arg6[%c0_20, %c0_21, %c0_22], %54 {strides = array<i32>} : memref<1x4x256xf32, #tpu.memory_space<vmem>>, vector<1x4x256xf32>,
    } else {
    }
    return
  }
  func.func @transform_0(%arg0: i32, %arg1: i32, %arg2: i32) -> (i32, i32) {
    %c0_i32 = arith.constant 0 : i32
    %c0_i32_0 = arith.constant 0 : i32
    return %c0_i32, %arg1 : i32, i32
  }
  func.func @transform_1(%arg0: i32, %arg1: i32, %arg2: i32) -> (i32, i32, i32) {
    %c0_i32 = arith.constant 0 : i32
    %c0_i32_0 = arith.constant 0 : i32
    return %arg0, %arg2, %c0_i32 : i32, i32, i32
  }
  func.func @transform_2(%arg0: i32, %arg1: i32, %arg2: i32) -> (i32, i32, i32) {
    %c0_i32 = arith.constant 0 : i32
    %c0_i32_0 = arith.constant 0 : i32
    return %arg0, %c0_i32, %arg2 : i32, i32, i32
  }
  func.func @transform_3(%arg0: i32, %arg1: i32, %arg2: i32) -> (i32, i32, i32) {
    %c0_i32 = arith.constant 0 : i32
    %c0_i32_0 = arith.constant 0 : i32
    return %arg0, %c0_i32, %arg1 : i32, i32, i32
  }
}

</mosaic_0001>

<llo_original>
// kernel: tpu_custom_call.1
$region0: #{tpu_custom_call.1}
  #allocation0 [shape = 'u32[]', space=smem, size = 0x4, offset = 0x4, fixed_abs, tag = 'smem constant byte address 0x4 - core index']
  #allocation1 [shape = 'u32[144,128]{1,0:T(1,128)}', space=vmem, size = 0x12000, scoped, tag = 'internal scratch']
  #allocation2 [shape = 'f32[5,256]{1,0:T(8,128)}', space=vmem, size = 0x2000, scoped, tag = 'scratch operand']
  %s0 = inlined_call_operand.vmem [shape: f32[2,256], index: 0, kind: input, shape index: {}]
  %s1 = inlined_call_operand.vmem [shape: f32[2,64,2], index: 1, kind: input, shape index: {}]
  %s2 = inlined_call_operand.vmem [shape: f32[2,5,64], index: 2, kind: input, shape index: {}]
  %s3 = inlined_call_operand.hbm [shape: f32[2,4,256], index: 3, kind: output, shape index: {}]
  %s4 = sld [smem:[#allocation0]]
  $region53: #{tpu_custom_call.1} parent=0
    _
  %s6 = ssub.s32 1, %s4
  %s7 = scalar_select 0, %s6, %s4
  $region1: #{tpu_custom_call.1} parent=0
    #allocation3 [shape = 'u8[8192]{0}', space=vmem, size = 0x2000, scoped, tag = 'output window, operand 0']
    #allocation4 [shape = 's32[2]{0}', space=sflag, size = 0x8, scoped, tag = 'scoped memory for tpu_custom_call.1']
    %8 = vsyncpa [#allocation4], 0
    %s9 = scalar_lea.sflag [#allocation4], 1
    %10 = vsyncpa %s9, 0
    loop: start=0, step=1, limit=4
    $region2: #{tpu_custom_call.1} parent=1 // loop_pre_header
      _
    $region3: #{tpu_custom_call.1} parent=1 // loop_header
      %s12 = sphi 0, %s16
      %p13 = scmp.ge.s32.totalorder %s12, 4
      %s19 = sphi 0, %s38
      %s20 = sphi 0, %s34
      %s21 = sphi 0, %s30
      %s22 = sphi 0, %s19
      %s23 = sphi 0, %s20
      %s24 = sphi 0, %s21
      %s25 = sphi 0, %s22
      %s26 = sphi 0, %s23
      %s27 = sphi 0, %s24
      %s41 = sphi 0, %s43
      %s44 = sphi 0, %s41
      %s45 = sphi 0, %s44
      %s61 = sphi 0, %s45
      %s69 = sphi 0, %s71
      %s72 = sphi 0, %s69
      %s73 = sphi 0, %s72
      %s89 = sphi 0, %s73
      %s97 = sphi 0, %s99
      %s100 = sphi 0, %s97
      %s101 = sphi 0, %s100
      %s117 = sphi 0, %s101
      %s125 = sphi 0, %s127
      %s128 = sphi 0, %s125
      %s129 = sphi 0, %s128
      %s145 = sphi 0, %s129
    $region4: #{tpu_custom_call.1} parent=1 // loop_header_branch
      %15 = sbr.rel (%p13) target = $region8
    $region5: #{tpu_custom_call.1} parent=1 // loop_body
      %s17 = ssub.s32 %s12, 1
      %s18 = ssub.s32 %s12, 2
      %s28 = sadd.s32 1, %s21
      %p29 = scmp.ge.s32.totalorder %s28, 1
      %s30 = scalar_select %p29, 0, %s28
      %s31 = sadd.s32 1, %s20
      %s32 = scalar_select %p29, %s31, %s20
      %p33 = scmp.ge.s32.totalorder %s32, 1
      %s34 = scalar_select %p33, 0, %s32
      %s35 = sadd.s32 1, %s19
      %s36 = scalar_select %p33, %s35, %s19
      %p37 = scmp.ge.s32.totalorder %s36, 2
      %s38 = scalar_select %p37, 0, %s36
      %s39 = ssub.s32 %s20, %s34
      %p40 = scmp.eq.s32.totalorder %s39, 0
      %s42 = sadd.s32 %s41, 1
      %s43 = scalar_select %p40, %s41, %s42
      %p46 = pneg %p40
      %p47 = scmp.eq.s32.totalorder %s12, 1
      %p48 = por %p46, %p47
      %p49 = scmp.ne.s32.totalorder %s41, %s44
      %p50 = scmp.eq.s32.totalorder %s12, 0
      %p51 = por %p49, %p50
      %p52 = scmp.ne.s32.totalorder %s41, %s44
      %p53 = scmp.eq.s32.totalorder %s17, 1
      %p54 = por %p52, %p53
      %p55 = scmp.ne.s32.totalorder %s44, %s45
      %p56 = scmp.eq.s32.totalorder %s17, 0
      %p57 = por %p55, %p56
      %p58 = scmp.ne.s32.totalorder %s44, %s45
      %p59 = scmp.eq.s32.totalorder %s18, 1
      %p60 = por %p58, %p59
      %p62 = scmp.ne.s32.totalorder %s45, %s61
      %p63 = scmp.eq.s32.totalorder %s18, 0
      %p64 = por %p62, %p63
      %s65 = ssub.s32 %s19, %s38
      %s66 = ssub.s32 %s21, %s30
      %s67 = sor.u32 %s65, %s66
      %p68 = scmp.eq.s32.totalorder %s67, 0
      %s70 = sadd.s32 %s69, 1
      %s71 = scalar_select %p68, %s69, %s70
      %p74 = pneg %p68
      %p75 = scmp.eq.s32.totalorder %s12, 1
      %p76 = por %p74, %p75
      %p77 = scmp.ne.s32.totalorder %s69, %s72
      %p78 = scmp.eq.s32.totalorder %s12, 0
      %p79 = por %p77, %p78
      %p80 = scmp.ne.s32.totalorder %s69, %s72
      %p81 = scmp.eq.s32.totalorder %s17, 1
      %p82 = por %p80, %p81
      %p83 = scmp.ne.s32.totalorder %s72, %s73
      %p84 = scmp.eq.s32.totalorder %s17, 0
      %p85 = por %p83, %p84
      %p86 = scmp.ne.s32.totalorder %s72, %s73
      %p87 = scmp.eq.s32.totalorder %s18, 1
      %p88 = por %p86, %p87
      %p90 = scmp.ne.s32.totalorder %s73, %s89
      %p91 = scmp.eq.s32.totalorder %s18, 0
      %p92 = por %p90, %p91
      %s93 = ssub.s32 %s19, %s38
      %s94 = ssub.s32 %s21, %s30
      %s95 = sor.u32 %s93, %s94
      %p96 = scmp.eq.s32.totalorder %s95, 0
      %s98 = sadd.s32 %s97, 1
      %s99 = scalar_select %p96, %s97, %s98
      %p102 = pneg %p96
      %p103 = scmp.eq.s32.totalorder %s12, 1
      %p104 = por %p102, %p103
      %p105 = scmp.ne.s32.totalorder %s97, %s100
      %p106 = scmp.eq.s32.totalorder %s12, 0
      %p107 = por %p105, %p106
      %p108 = scmp.ne.s32.totalorder %s97, %s100
      %p109 = scmp.eq.s32.totalorder %s17, 1
      %p110 = por %p108, %p109
      %p111 = scmp.ne.s32.totalorder %s100, %s101
      %p112 = scmp.eq.s32.totalorder %s17, 0
      %p113 = por %p111, %p112
      %p114 = scmp.ne.s32.totalorder %s100, %s101
      %p115 = scmp.eq.s32.totalorder %s18, 1
      %p116 = por %p114, %p115
      %p118 = scmp.ne.s32.totalorder %s101, %s117
      %p119 = scmp.eq.s32.totalorder %s18, 0
      %p120 = por %p118, %p119
      %s121 = ssub.s32 %s19, %s38
      %s122 = ssub.s32 %s20, %s34
      %s123 = sor.u32 %s121, %s122
      %p124 = scmp.eq.s32.totalorder %s123, 0
      %s126 = sadd.s32 %s125, 1
      %s127 = scalar_select %p124, %s125, %s126
      %p130 = pneg %p124
      %p131 = scmp.eq.s32.totalorder %s12, 1
      %p132 = por %p130, %p131
      %p133 = scmp.ne.s32.totalorder %s125, %s128
      %p134 = scmp.eq.s32.totalorder %s12, 0
      %p135 = por %p133, %p134
      %p136 = scmp.ne.s32.totalorder %s125, %s128
      %p137 = scmp.eq.s32.totalorder %s17, 1
      %p138 = por %p136, %p137
      %p139 = scmp.ne.s32.totalorder %s128, %s129
      %p140 = scmp.eq.s32.totalorder %s17, 0
      %p141 = por %p139, %p140
      %p142 = scmp.ne.s32.totalorder %s128, %s129
      %p143 = scmp.eq.s32.totalorder %s18, 1
      %p144 = por %p142, %p143
      %p146 = scmp.ne.s32.totalorder %s129, %s145
      %p147 = scmp.eq.s32.totalorder %s18, 0
      %p148 = por %p146, %p147
      %p149 = scmp.le.s32.totalorder 1, %s12
      %p150 = scmp.lt.s32.totalorder %s12, 3
      %p151 = pnand %p149, %p150
      %p152 = pneg %p151
      // Predicated region
      $region9: #{tpu_custom_call.1} parent=5 // pred_check
        _
      $region10: #{tpu_custom_call.1} parent=5 // pred_check_branch
        %154 = sbr.rel (%p151) target = $region12
      $region11: #{tpu_custom_call.1} parent=5 // pred_region
        %s155 = ssub.s32 %s12, 1
        // Predicated region
        $region13: #{tpu_custom_call.1} parent=11 // pred_check
          %p156 = pneg %p57
        $region14: #{tpu_custom_call.1} parent=11 // pred_check_branch
          %158 = sbr.rel (%p156) target = $region16
        $region15: #{tpu_custom_call.1} parent=11 // pred_region
          %s159 = smul.u32 2, %s23
          %p160 = scmp.lt.s32.totalorder %s159, 1
          %s161 = scalar_select %p160, %s159, 1
          %s162 = smul.addr %s161, 2
          %s163 = scalar_lea.vmem %s0, %s162
          %s164 = smul.u32 2, %s23
        $region16: #{tpu_custom_call.1} parent=11 // pred_fallthru
          _
      $region12: #{tpu_custom_call.1} parent=5 // pred_fallthru
        _
      %p165 = scmp.lt.s32.totalorder %s12, 2
      // Predicated region
      $region17: #{tpu_custom_call.1} parent=5 // pred_check
        %p166 = pneg %p165
      $region18: #{tpu_custom_call.1} parent=5 // pred_check_branch
        %168 = sbr.rel (%p166) target = $region20
      $region19: #{tpu_custom_call.1} parent=5 // pred_region
        // Predicated region
        $region21: #{tpu_custom_call.1} parent=19 // pred_check
          %p169 = pneg %p79
        $region22: #{tpu_custom_call.1} parent=19 // pred_check_branch
          %171 = sbr.rel (%p169) target = $region24
        $region23: #{tpu_custom_call.1} parent=19 // pred_region
          %s172 = smul.u32 8, %s21
          %p173 = scmp.lt.s32.totalorder %s19, 1
          %s174 = scalar_select %p173, %s19, 1
          %p175 = scmp.lt.s32.totalorder %s172, 7
          %s176 = scalar_select %p175, %s172, 7
          %s177 = smul.addr %s174, 8
          %s178 = sadd.s32 %s176, %s177
          %s179 = smul.addr %s178, 8
          %s180 = scalar_lea.vmem %s1, %s179
          %s181 = smul.u32 8, %s21
        $region24: #{tpu_custom_call.1} parent=19 // pred_fallthru
          _
        // Predicated region
        $region25: #{tpu_custom_call.1} parent=19 // pred_check
          %p182 = pneg %p107
        $region26: #{tpu_custom_call.1} parent=19 // pred_check_branch
          %184 = sbr.rel (%p182) target = $region28
        $region27: #{tpu_custom_call.1} parent=19 // pred_region
          %p185 = scmp.lt.s32.totalorder %s19, 1
          %s186 = scalar_select %p185, %s19, 1
          %p187 = scmp.lt.s32.totalorder %s21, 0
          %s188 = scalar_select %p187, %s21, 0
          %s189 = sadd.s32 %s188, %s186
          %s190 = smul.addr %s189, 8
          %s191 = scalar_lea.vmem %s2, %s190
        $region28: #{tpu_custom_call.1} parent=19 // pred_fallthru
          _
      $region20: #{tpu_custom_call.1} parent=5 // pred_fallthru
        _
      %p192 = scmp.le.s32.totalorder 1, %s12
      %p193 = scmp.lt.s32.totalorder %s12, 3
      %p194 = pnand %p192, %p193
      %p195 = pneg %p194
      // Predicated region
      $region29: #{tpu_custom_call.1} parent=5 // pred_check
        _
      $region30: #{tpu_custom_call.1} parent=5 // pred_check_branch
        %197 = sbr.rel (%p194) target = $region32
      $region31: #{tpu_custom_call.1} parent=5 // pred_region
        %s198 = ssub.s32 %s12, 1
        %s199 = smul.u32 2, %s23
        %p200 = scmp.lt.s32.totalorder %s199, 1
        %s201 = scalar_select %p200, %s199, 1
        %s202 = smul.addr %s201, 2
        %s203 = scalar_lea.vmem %s0, %s202
        %p204 = pneg %p57
        %p205 = pneg %p54
        %s206 = smul.u32 8, %s24
        %p207 = scmp.lt.s32.totalorder %s22, 1
        %s208 = scalar_select %p207, %s22, 1
        %p209 = scmp.lt.s32.totalorder %s206, 7
        %s210 = scalar_select %p209, %s206, 7
        %s211 = smul.addr %s208, 8
        %s212 = sadd.s32 %s210, %s211
        %s213 = smul.addr %s212, 8
        %s214 = scalar_lea.vmem %s1, %s213
        %p215 = pneg %p85
        %p216 = pneg %p82
        %p217 = scmp.lt.s32.totalorder %s22, 1
        %s218 = scalar_select %p217, %s22, 1
        %p219 = scmp.lt.s32.totalorder %s24, 0
        %s220 = scalar_select %p219, %s24, 0
        %s221 = sadd.s32 %s220, %s218
        %s222 = smul.addr %s221, 8
        %s223 = scalar_lea.vmem %s2, %s222
        %p224 = pneg %p113
        %p225 = pneg %p110
        %p226 = pneg %p141
        %p227 = pneg %p138
        %s228 = sand.u32 %s128, 1
        %s229 = scalar_lea.sflag [#allocation4], %s228
        %s230 = sand.u32 %s128, 1
        %s231 = smul.addr %s230, 8
        %s232 = scalar_lea.vmem [#allocation3], %s231
        %s233 = smul.u32 2, %s23
        %p234 = scmp.lt.s32.totalorder %s233, 1
        %s235 = scalar_select %p234, %s233, 1
        %s236 = smul.addr %s235, 2
        %s237 = scalar_lea.vmem %s0, %s236
        %s238 = smul.u32 2, %s23
        %s239 = smul.u32 8, %s24
        %p240 = scmp.lt.s32.totalorder %s22, 1
        %s241 = scalar_select %p240, %s22, 1
        %p242 = scmp.lt.s32.totalorder %s239, 7
        %s243 = scalar_select %p242, %s239, 7
        %s244 = smul.addr %s241, 8
        %s245 = sadd.s32 %s243, %s244
        %s246 = smul.addr %s245, 8
        %s247 = scalar_lea.vmem %s1, %s246
        %s248 = smul.u32 8, %s24
        %p249 = scmp.lt.s32.totalorder %s22, 1
        %s250 = scalar_select %p249, %s22, 1
        %p251 = scmp.lt.s32.totalorder %s24, 0
        %s252 = scalar_select %p251, %s24, 0
        %s253 = sadd.s32 %s252, %s250
        %s254 = smul.addr %s253, 8
        %s255 = scalar_lea.vmem %s2, %s254
        %s256 = smul.u32 2, %s23
        %p257 = scmp.eq.s32.totalorder %s24, 0
        // Predicated region
        $region33: #{tpu_custom_call.1} parent=31 // pred_check
          %p258 = pneg %p257
        $region34: #{tpu_custom_call.1} parent=31 // pred_check_branch
          %260 = sbr.rel (%p258) target = $region36
        $region35: #{tpu_custom_call.1} parent=31 // pred_region
          %261 = vst [vmem:[#allocation2] sm:$0x1f] 0.0
          %262 = vst [vmem:[#allocation2 + $0x8] sm:$0x1f] 0.0
        $region36: #{tpu_custom_call.1} parent=31 // pred_fallthru
          _
        %v263 = vld [vmem:[%s247] sm:$0xff]
        %v264 = vld [vmem:[%s247 + $0x8] sm:$0xff]
        %v265 = vld [vmem:[%s247 + $0x10] sm:$0xff]
        %v266 = vld [vmem:[%s247 + $0x18] sm:$0xff]
        %v267 = vld [vmem:[%s247 + $0x20] sm:$0xff]
        %v268 = vld [vmem:[%s247 + $0x28] sm:$0xff]
        %v269 = vld [vmem:[%s247 + $0x30] sm:$0xff]
        %v270 = vld [vmem:[%s247 + $0x38] sm:$0xff]
        %v271 = vld [vmem:[%s255] sm:$0x1f]
        %v272 = vld [vmem:[%s237] ss:$2 sm:$0x3]
        %s273 = scalar_lea.vmem %s237, 1
        %v274 = vld [vmem:[%s273] ss:$2 sm:$0x3]
        %v276 = vlaneseq
        %v277 = vshrl.u32 %v276, 7
        %v278 = vsub.s32 0, %v277
        %v279 = vrot.slane %v272, %v278
        %v280 = vlaneseq
        %v281 = vshrl.u32 %v280, 7
        %v282 = vsub.s32 1, %v281
        %v283 = vrot.slane %v272, %v282
        %287 = vset.pattern.permute.xlu0 0
        %288 = vperm.xlu0 %287, %v263
        %v289 = vpop.permute.xlu0 %288
        %292 = vset.pattern.permute.xlu0 0
        %293 = vperm.xlu0 %292, %v264
        %v294 = vpop.permute.xlu0 %293
        %297 = vset.pattern.permute.xlu0 0
        %298 = vperm.xlu0 %297, %v265
        %v299 = vpop.permute.xlu0 %298
        %302 = vset.pattern.permute.xlu0 0
        %303 = vperm.xlu0 %302, %v266
        %v304 = vpop.permute.xlu0 %303
        %307 = vset.pattern.permute.xlu0 0
        %308 = vperm.xlu0 %307, %v267
        %v309 = vpop.permute.xlu0 %308
        %312 = vset.pattern.permute.xlu0 0
        %313 = vperm.xlu0 %312, %v268
        %v314 = vpop.permute.xlu0 %313
        %317 = vset.pattern.permute.xlu0 0
        %318 = vperm.xlu0 %317, %v269
        %v319 = vpop.permute.xlu0 %318
        %322 = vset.pattern.permute.xlu0 0
        %323 = vperm.xlu0 %322, %v270
        %v324 = vpop.permute.xlu0 %323
        %v326 = vsub.f32 %v279, %v289
        %v327 = vsub.f32 %v283, %v289
        %v328 = vsub.f32 %v279, %v294
        %v329 = vsub.f32 %v283, %v294
        %v330 = vsub.f32 %v279, %v299
        %v331 = vsub.f32 %v283, %v299
        %v332 = vsub.f32 %v279, %v304
        %v333 = vsub.f32 %v283, %v304
        %v334 = vsub.f32 %v279, %v309
        %v335 = vsub.f32 %v283, %v309
        %v336 = vsub.f32 %v279, %v314
        %v337 = vsub.f32 %v283, %v314
        %v338 = vsub.f32 %v279, %v319
        %v339 = vsub.f32 %v283, %v319
        %v340 = vsub.f32 %v279, %v324
        %v341 = vsub.f32 %v283, %v324
        %v343 = vlaneseq
        %v344 = vshrl.u32 %v343, 7
        %v345 = vsub.s32 0, %v344
        %v346 = vrot.slane %v274, %v345
        %v347 = vlaneseq
        %v348 = vshrl.u32 %v347, 7
        %v349 = vsub.s32 1, %v348
        %v350 = vrot.slane %v274, %v349
        %353 = vset.pattern.permute.xlu0 1
        %354 = vperm.xlu0 %353, %v263
        %v355 = vpop.permute.xlu0 %354
        %357 = vset.pattern.permute.xlu0 1
        %358 = vperm.xlu0 %357, %v264
        %v359 = vpop.permute.xlu0 %358
        %361 = vset.pattern.permute.xlu0 1
        %362 = vperm.xlu0 %361, %v265
        %v363 = vpop.permute.xlu0 %362
        %365 = vset.pattern.permute.xlu0 1
        %366 = vperm.xlu0 %365, %v266
        %v367 = vpop.permute.xlu0 %366
        %369 = vset.pattern.permute.xlu0 1
        %370 = vperm.xlu0 %369, %v267
        %v371 = vpop.permute.xlu0 %370
        %373 = vset.pattern.permute.xlu0 1
        %374 = vperm.xlu0 %373, %v268
        %v375 = vpop.permute.xlu0 %374
        %377 = vset.pattern.permute.xlu0 1
        %378 = vperm.xlu0 %377, %v269
        %v379 = vpop.permute.xlu0 %378
        %381 = vset.pattern.permute.xlu0 1
        %382 = vperm.xlu0 %381, %v270
        %v383 = vpop.permute.xlu0 %382
        %v385 = vsub.f32 %v346, %v355
        %v386 = vsub.f32 %v350, %v355
        %v387 = vsub.f32 %v346, %v359
        %v388 = vsub.f32 %v350, %v359
        %v389 = vsub.f32 %v346, %v363
        %v390 = vsub.f32 %v350, %v363
        %v391 = vsub.f32 %v346, %v367
        %v392 = vsub.f32 %v350, %v367
        %v393 = vsub.f32 %v346, %v371
        %v394 = vsub.f32 %v350, %v371
        %v395 = vsub.f32 %v346, %v375
        %v396 = vsub.f32 %v350, %v375
        %v397 = vsub.f32 %v346, %v379
        %v398 = vsub.f32 %v350, %v379
        %v399 = vsub.f32 %v346, %v383
        %v400 = vsub.f32 %v350, %v383
        %v401 = vmul.f32 %v326, %v326
        %v402 = vmul.f32 %v327, %v327
        %v403 = vmul.f32 %v328, %v328
        %v404 = vmul.f32 %v329, %v329
        %v405 = vmul.f32 %v330, %v330
        %v406 = vmul.f32 %v331, %v331
        %v407 = vmul.f32 %v332, %v332
        %v408 = vmul.f32 %v333, %v333
        %v409 = vmul.f32 %v334, %v334
        %v410 = vmul.f32 %v335, %v335
        %v411 = vmul.f32 %v336, %v336
        %v412 = vmul.f32 %v337, %v337
        %v413 = vmul.f32 %v338, %v338
        %v414 = vmul.f32 %v339, %v339
        %v415 = vmul.f32 %v340, %v340
        %v416 = vmul.f32 %v341, %v341
        %v417 = vmul.f32 %v385, %v385
        %v418 = vmul.f32 %v386, %v386
        %v419 = vmul.f32 %v387, %v387
        %v420 = vmul.f32 %v388, %v388
        %v421 = vmul.f32 %v389, %v389
        %v422 = vmul.f32 %v390, %v390
        %v423 = vmul.f32 %v391, %v391
        %v424 = vmul.f32 %v392, %v392
        %v425 = vmul.f32 %v393, %v393
        %v426 = vmul.f32 %v394, %v394
        %v427 = vmul.f32 %v395, %v395
        %v428 = vmul.f32 %v396, %v396
        %v429 = vmul.f32 %v397, %v397
        %v430 = vmul.f32 %v398, %v398
        %v431 = vmul.f32 %v399, %v399
        %v432 = vmul.f32 %v400, %v400
        %v433 = vadd.f32 %v401, %v417
        %v434 = vadd.f32 %v402, %v418
        %v435 = vadd.f32 %v403, %v419
        %v436 = vadd.f32 %v404, %v420
        %v437 = vadd.f32 %v405, %v421
        %v438 = vadd.f32 %v406, %v422
        %v439 = vadd.f32 %v407, %v423
        %v440 = vadd.f32 %v408, %v424
        %v441 = vadd.f32 %v409, %v425
        %v442 = vadd.f32 %v410, %v426
        %v443 = vadd.f32 %v411, %v427
        %v444 = vadd.f32 %v412, %v428
        %v445 = vadd.f32 %v413, %v429
        %v446 = vadd.f32 %v414, %v430
        %v447 = vadd.f32 %v415, %v431
        %v448 = vadd.f32 %v416, %v432
        %v449 = vsub.f32 0.09, %v433
        %v450 = vsub.f32 0.09, %v434
        %v451 = vsub.f32 0.09, %v435
        %v452 = vsub.f32 0.09, %v436
        %v453 = vsub.f32 0.09, %v437
        %v454 = vsub.f32 0.09, %v438
        %v455 = vsub.f32 0.09, %v439
        %v456 = vsub.f32 0.09, %v440
        %v457 = vsub.f32 0.09, %v441
        %v458 = vsub.f32 0.09, %v442
        %v459 = vsub.f32 0.09, %v443
        %v460 = vsub.f32 0.09, %v444
        %v461 = vsub.f32 0.09, %v445
        %v462 = vsub.f32 0.09, %v446
        %v463 = vsub.f32 0.09, %v447
        %v464 = vsub.f32 0.09, %v448
        %v465 = vmax.f32 %v449, 0.0
        %v466 = vmax.f32 %v450, 0.0
        %v467 = vmax.f32 %v451, 0.0
        %v468 = vmax.f32 %v452, 0.0
        %v469 = vmax.f32 %v453, 0.0
        %v470 = vmax.f32 %v454, 0.0
        %v471 = vmax.f32 %v455, 0.0
        %v472 = vmax.f32 %v456, 0.0
        %v473 = vmax.f32 %v457, 0.0
        %v474 = vmax.f32 %v458, 0.0
        %v475 = vmax.f32 %v459, 0.0
        %v476 = vmax.f32 %v460, 0.0
        %v477 = vmax.f32 %v461, 0.0
        %v478 = vmax.f32 %v462, 0.0
        %v479 = vmax.f32 %v463, 0.0
        %v480 = vmax.f32 %v464, 0.0
        %v481 = vld [vmem:[#allocation2] sm:$0x1f]
        %v482 = vld [vmem:[#allocation2 + $0x8] sm:$0x1f]
        %vm483 = vcmask 523264
        %v485 = vsel %vm483, %v271, 0
        %487 = vmatprep.subr.mxu0 0.0
        %488 = vmatpush1.msra.mxu0 0.0
        %489 = vmatprep.subr.mxu0 0.0
        %490 = vmatpush1.msra.mxu0 0.0
        %491 = vmatprep.subr.mxu0 0.0
        %492 = vmatpush1.msra.mxu0 0.0
        %493 = vmatprep.subr.mxu0 0.0
        %494 = vmatpush1.msra.mxu0 0.0
        %495 = vmatprep.subr.mxu0 0.0
        %496 = vmatpush1.msra.mxu0 0.0
        %497 = vmatprep.subr.mxu0 0.0
        %498 = vmatpush1.msra.mxu0 0.0
        %499 = vmatprep.subr.mxu0 0.0
        %500 = vmatpush1.msra.mxu0 0.0
        %501 = vmatprep.subr.mxu0 0.0
        %502 = vmatpush1.msra.mxu0 0.0
        %503 = vmatprep.subr.mxu0 %v480
        %504 = vmatpush1.msra.mxu0 %v479
        %505 = vmatprep.subr.mxu0 %v478
        %506 = vmatpush1.msra.mxu0 %v477
        %507 = vmatprep.subr.mxu0 %v476
        %508 = vmatpush1.msra.mxu0 %v475
        %509 = vmatprep.subr.mxu0 %v474
        %510 = vmatpush1.msra.mxu0 %v473
        %511 = vmatprep.subr.mxu0 %v472
        %512 = vmatpush1.msra.mxu0 %v471
        %513 = vmatprep.subr.mxu0 %v470
        %514 = vmatpush1.msra.mxu0 %v469
        %515 = vmatprep.subr.mxu0 %v468
        %516 = vmatpush1.msra.mxu0 %v467
        %517 = vmatprep.subr.mxu0 %v466
        %518 = vmatpush1.msra.mxu0 %v465
        %519 = vmatprep.subr.mxu0 0.0
        %520 = vmatpush2.msra.mxu0 0.0
        %521 = vmatprep.subr.mxu0 0.0
        %522 = vmatpush2.msra.mxu0 0.0
        %523 = vmatprep.subr.mxu0 0.0
        %524 = vmatpush2.msra.mxu0 0.0
        %525 = vmatprep.subr.mxu0 0.0
        %526 = vmatpush2.msra.mxu0 0.0
        %527 = vmatprep.subr.mxu0 0.0
        %528 = vmatpush2.msra.mxu0 0.0
        %529 = vmatprep.subr.mxu0 0.0
        %530 = vmatpush2.msra.mxu0 0.0
        %531 = vmatprep.subr.mxu0 0.0
        %532 = vmatpush2.msra.mxu0 0.0
        %533 = vmatprep.subr.mxu0 0.0
        %534 = vmatpush2.msra.mxu0 0.0
        %535 = vmatprep.subr.mxu0 0.0
        %536 = vmatpush2.msra.mxu0 0.0
        %537 = vmatprep.subr.mxu0 0.0
        %538 = vmatpush2.msra.mxu0 0.0
        %539 = vmatprep.subr.mxu0 0.0
        %540 = vmatpush2.msra.mxu0 0.0
        %541 = vmatprep.subr.mxu0 0.0
        %542 = vmatpush2.msra.mxu0 0.0
        %543 = vmatprep.subr.mxu0 0.0
        %544 = vmatpush2.msra.mxu0 0.0
        %545 = vmatprep.subr.mxu0 0.0
        %546 = vmatpush2.msra.mxu0 0.0
        %547 = vmatprep.subr.mxu0 0.0
        %548 = vmatpush2.msra.mxu0 0.0
        %549 = vmatprep.subr.mxu0 0.0
        %550 = vmatpush2.msra.mxu0 0.0
        %551 = vmatprep.mubr.f32.mxu0 0.0
        %552 = vmatmul.mubr.f32.gmra.mxu0 %v485
        %v553 = vpop.f32.mrf.mxu0
        %v554 = vadd.f32 0.0, %v553
        %v555 = vpop.f32.mrf.mxu0
        %v556 = vadd.f32 0.0, %v555
        %557 = vdwg.mxu0
        %v558 = vadd.f32 %v481, %v554
        %v559 = vadd.f32 %v482, %v556
        %560 = vst [vmem:[#allocation2] sm:$0x1f] %v558
        %561 = vst [vmem:[#allocation2 + $0x8] sm:$0x1f] %v559
        // Predicated region
        $region37: #{tpu_custom_call.1} parent=31 // pred_check
          %p562 = pneg %p257
        $region38: #{tpu_custom_call.1} parent=31 // pred_check_branch
          %564 = sbr.rel (%p562) target = $region40
        $region39: #{tpu_custom_call.1} parent=31 // pred_region
          %s565 = scalar_lea.vmem [#allocation2], 4
          %v566 = vld [vmem:[%s565] ss:$8 sm:$0x3]
          %v567 = vadd.f32 %v566, 9e-10
          %v568 = vrcp.pop %v567
          %v569 = vmul.f32 %v567, %v568
          %v570 = vsub.f32 2.0, %v569
          %v571 = vmul.f32 %v568, %v570
          %v572 = vmul.f32 %v567, %v571
          %v573 = vsub.f32 2.0, %v572
          %v574 = vmul.f32 %v571, %v573
          %v575 = vld [vmem:[#allocation2] sm:$0xf]
          %v576 = vld [vmem:[#allocation2 + $0x8] sm:$0xf]
          %v578 = vlaneseq
          %v579 = vshrl.u32 %v578, 7
          %v580 = vsub.s32 0, %v579
          %v581 = vrot.slane %v574, %v580
          %v582 = vlaneseq
          %v583 = vshrl.u32 %v582, 7
          %v584 = vsub.s32 1, %v583
          %v585 = vrot.slane %v574, %v584
          %v588 = vmul.f32 %v575, %v581
          %v589 = vmul.f32 %v576, %v585
          %v592 = vcombine.low %v588, %v589
          %594 = vst [vmem:[%s232] sm:$0xff] %v592
        $region40: #{tpu_custom_call.1} parent=31 // pred_fallthru
          _
        %s595 = sand.u32 %s128, 1
        %s596 = scalar_lea.sflag [#allocation4], %s595
        %s597 = sand.u32 %s128, 1
        %s598 = smul.addr %s597, 8
        %s599 = scalar_lea.vmem [#allocation3], %s598
        // Predicated region
        $region41: #{tpu_custom_call.1} parent=31 // pred_check
          %p600 = pneg %p138
        $region42: #{tpu_custom_call.1} parent=31 // pred_check_branch
          %602 = sbr.rel (%p600) target = $region44
        $region43: #{tpu_custom_call.1} parent=31 // pred_region
          %s603 = smul.u32 2, %s23
          %s605 = ssub.s32 128, 128
          %606 = vsyncadd %s596, %s605
          %s607 = smul.addr %s22, 2
          %s608 = sadd.s32 %s603, %s607
          %s609 = smul.addr %s608, 64
          %s610 = scalar_lea.hbm %s3, %s609
          %s612 = sshll.u32 %s599, 4
          %s613 = int_to_ptr.vmem [resolvable:$true] %s612
          %615 = dma.vmem_to_hbm [thread:$0]  %s613, 128, %s610, %s596
        $region44: #{tpu_custom_call.1} parent=31 // pred_fallthru
          _
      $region32: #{tpu_custom_call.1} parent=5 // pred_fallthru
        _
      %p616 = scmp.le.s32.totalorder 2, %s12
      // Predicated region
      $region45: #{tpu_custom_call.1} parent=5 // pred_check
        %p617 = pneg %p616
      $region46: #{tpu_custom_call.1} parent=5 // pred_check_branch
        %619 = sbr.rel (%p617) target = $region48
      $region47: #{tpu_custom_call.1} parent=5 // pred_region
        %s620 = ssub.s32 %s12, 2
        // Predicated region
        $region49: #{tpu_custom_call.1} parent=47 // pred_check
          %p621 = pneg %p144
        $region50: #{tpu_custom_call.1} parent=47 // pred_check_branch
          %623 = sbr.rel (%p621) target = $region52
        $region51: #{tpu_custom_call.1} parent=47 // pred_region
          %s624 = sand.u32 %s129, 1
          %s625 = scalar_lea.sflag [#allocation4], %s624
          %s626 = sand.u32 %s129, 1
          %s627 = smul.addr %s626, 8
          %s628 = scalar_lea.vmem [#allocation3], %s627
          %629 = dma.done %s625, 128
        $region52: #{tpu_custom_call.1} parent=47 // pred_fallthru
          _
      $region48: #{tpu_custom_call.1} parent=5 // pred_fallthru
        _
    $region6: #{tpu_custom_call.1} parent=1 // loop_footer
      %s16 = sadd.s32 1, %s12
    $region7: #{tpu_custom_call.1} parent=1 // loop_footer_branch
      %11 = sbr.rel target = $region3
    $region8: #{tpu_custom_call.1} parent=1 // loop_exit
      _
    %630 = vsyncpa [#allocation4], 1
    %s631 = scalar_lea.sflag [#allocation4], 1
    %632 = vsyncpa %s631, 1

</llo_original>
